<compile_context>
chip_gen: v5e
topology: v5e:2x2
jax: 0.10.0
libtpu: 0.0.40
codegen_flags: <defaults>
</compile_context>

<pallas_src>
import math
from functools import partial

import jax
import jax.numpy as jnp
from jax.experimental import pallas as pl
from jax.experimental.pallas import tpu as pltpu

_LANE = 128
_BLOCK_BUDGET_BYTES = 8 * 1024 * 1024   # all block buffers (double-buffering included)
_VMEM_LIMIT_BYTES = 32 * 1024 * 1024    # portable across v5e / v6e / v7x
_XLA_FAST_PATH_BYTES = 256 * 1024       # below this, launch overhead dominates
_MIN_GRID_STEPS = 8                     # keep both v7x TCs busy + DMA overlap


def _round_up(n: int, m: int) -> int:
    return -(-n // m) * m


def _round_down(n: int, m: int) -> int:
    return (n // m) * m


def _sublane_rows(dtype) -> int:
    # 8 rows for 4-byte, 16 for 2-byte, 32 for 1-byte dtypes (packed sublanes).
    return max(8, 32 // jnp.dtype(dtype).itemsize)


def make_positional_encoding(hidden_dim: int, max_len: int = 5000,
                             dtype=jnp.float32) -> jnp.ndarray:
    """Deterministic buffer matching the PyTorch __init__ (plain JAX setup glue).

    Pass dtype=jnp.bfloat16 for bf16 models: pe is then stored once in the model
    dtype, halving its HBM traffic and VMEM footprint inside the kernel.
    """
    position = jnp.arange(max_len, dtype=jnp.float32)[:, None]              # [max_len, 1]
    div_term = jnp.exp(
        jnp.arange(0, hidden_dim, 2, dtype=jnp.float32)
        * (-math.log(10000.0) / hidden_dim)
    )                                                                        # [ceil(H/2)]
    angles = position * div_term                                             # [max_len, ceil(H/2)]
    pe = jnp.zeros((max_len, hidden_dim), dtype=jnp.float32)
    pe = pe.at[:, 0::2].set(jnp.sin(angles))
    # Guard odd hidden_dim (cos columns = floor(H/2)); identical to PyTorch for even H.
    pe = pe.at[:, 1::2].set(jnp.cos(angles)[:, : hidden_dim // 2])
    return pe[None, :, :].astype(dtype)                                      # [1, max_len, H]


def _add_pe_kernel(x_ref, pe_ref, o_ref):
    # Elementwise broadcast add on the VPU; accumulate in f32, cast to output dtype.
    x = x_ref[...].astype(jnp.float32)
    pe = pe_ref[...].astype(jnp.float32)
    o_ref[...] = (x + pe).astype(o_ref.dtype)


@partial(jax.jit, static_argnames=("force_pallas",))
def positional_encoding_forward(x: jnp.ndarray, pe: jnp.ndarray, *,
                                force_pallas: bool = False) -> jnp.ndarray:
    """x: [B, S, H], pe: [1, max_len, H] -> x + pe[:, :S, :] (same dtype as x)."""
    B, S, H = x.shape
    x_bytes = x.dtype.itemsize
    pe_bytes = pe.dtype.itemsize
    sub_x = _sublane_rows(x.dtype)
    sub_pe = _sublane_rows(pe.dtype)

    # Tiny-shape fast path: launch + per-step overhead would dominate.
    if (not force_pallas) and B * S * H * x_bytes < _XLA_FAST_PATH_BYTES:
        return (x.astype(jnp.float32) + pe[:, :S, :].astype(jnp.float32)).astype(x.dtype)

    compiler_params = pltpu.CompilerParams(
        dimension_semantics=("parallel", "parallel"),   # megacore-splittable grid
        vmem_limit_bytes=_VMEM_LIMIT_BYTES,
    )

    # ---- Layout A: small batch + lane-dense hidden dim -> S on the sublane axis ----
    # Full sublane utilization (no padded rows), unmasked lane-dense stores.
    # pe is re-read once per batch element; cost S*H*(B-1) bytes, negligible vs
    # the 2*B*S*H bytes of x/out traffic.
    if H % _LANE == 0 and B < sub_x and S >= sub_x:
        # Block bytes per S-row: x + out (2x double-buffered each) + pe (double-buffered).
        per_row_bytes = H * (4 * x_bytes + 2 * pe_bytes)
        s_budget = max(sub_x, _round_down(_BLOCK_BUDGET_BYTES // per_row_bytes, sub_x))
        # Keep at least ~_MIN_GRID_STEPS total grid steps (B * s_steps).
        min_s_steps = pl.cdiv(_MIN_GRID_STEPS, B)
        s_steps_cap = max(sub_x, _round_down(pl.cdiv(S, min_s_steps), sub_x))
        s_tile = min(s_budget, s_steps_cap, _round_down(S, sub_x))
        grid = (B, pl.cdiv(S, s_tile))   # ragged last S-tile handled by OOB masking

        return pl.pallas_call(
            _add_pe_kernel,
            out_shape=jax.ShapeDtypeStruct((B, S, H), x.dtype),
            grid_spec=pltpu.PrefetchScalarGridSpec(
                num_scalar_prefetch=0,
                grid=grid,
                in_specs=[
                    pl.BlockSpec((1, s_tile, H), lambda b, s: (b, s, 0)),
                    # pe windowed directly from the full [1, max_len, H] buffer.
                    pl.BlockSpec((1, s_tile, H), lambda b, s: (0, s, 0)),
                ],
                out_specs=pl.BlockSpec((1, s_tile, H), lambda b, s: (b, s, 0)),
            ),
            compiler_params=compiler_params,
        )(x, pe)

    # ---- Layout B: flatten (S, H) into one lane axis (lane-dense for any H) ----
    total = S * H
    x2 = x.reshape(B, total)        # free reshape (contiguous trailing dims)
    pe_flat = pe.reshape(1, -1)     # full [1, max_len*H]; windowed by the BlockSpec

    if total >= _LANE:
        # Batch tile so even a minimal 128-lane block fits the budget (huge-B safety).
        max_b = max(sub_x, _round_down(_BLOCK_BUDGET_BYTES // (_LANE * 4 * x_bytes), sub_x))
        b_tile = min(B, max_b)
        b_steps = pl.cdiv(B, b_tile)

        # VMEM per lane, INCLUDING sublane padding:
        #   x + out blocks pad to round_up(b_tile, sub_x) rows (4 buffers total),
        #   the (1, lane_tile) pe block pads to one full sublane group (2 buffers).
        padded_b = _round_up(b_tile, sub_x)
        bytes_per_lane = 4 * padded_b * x_bytes + 2 * sub_pe * pe_bytes
        l_budget = max(_LANE, _round_down(_BLOCK_BUDGET_BYTES // bytes_per_lane, _LANE))

        # Keep >= ~_MIN_GRID_STEPS total steps so both v7x TCs get work and the
        # pipeline keeps prefetch/writeback overlapped on single-TC chips.
        min_lane_steps = pl.cdiv(_MIN_GRID_STEPS, b_steps)
        l_steps_cap = max(_LANE, _round_down(pl.cdiv(total, min_lane_steps), _LANE))

        lane_tile = max(_LANE, min(l_budget, l_steps_cap, _round_down(total, _LANE)))
        pe_in = pe_flat
        grid = (b_steps, pl.cdiv(total, lane_tile))   # ragged edges -> OOB masking
    else:
        # Tiny-lane safety path: single full-extent lane block, batch still tiled.
        max_b = max(sub_x, _round_down(
            _BLOCK_BUDGET_BYTES // (max(total, 1) * 4 * x_bytes), sub_x))
        b_tile = min(B, max_b)
        lane_tile = total
        pe_in = pe_flat[:, :total]
        grid = (pl.cdiv(B, b_tile), 1)

    out2 = pl.pallas_call(
        _add_pe_kernel,
        out_shape=jax.ShapeDtypeStruct((B, total), x.dtype),
        grid_spec=pltpu.PrefetchScalarGridSpec(
            num_scalar_prefetch=0,
            grid=grid,
            in_specs=[
                # x: batch tile on sublanes, lane_tile lanes per step.
                pl.BlockSpec((b_tile, lane_tile), lambda b, j: (b, j)),
                # pe: shared across the batch tile via sublane broadcast.
                pl.BlockSpec((1, lane_tile), lambda b, j: (0, j)),
            ],
            out_specs=pl.BlockSpec((b_tile, lane_tile), lambda b, j: (b, j)),
        ),
        compiler_params=compiler_params,
    )(x2, pe_in)

    return out2.reshape(B, S, H)


if __name__ == "__main__":
    max_len = 5000

    # 1) Demo shape (H=32 not a multiple of 128 -> flattened lane layout), Pallas forced
    #    so the kernel itself is exercised despite the tiny-shape XLA fast path.
    B, S, H = 2, 8, 32
    key = jax.random.PRNGKey(0)
    x = jax.random.normal(key, (B, S, H), dtype=jnp.float32)
    pe = make_positional_encoding(H, max_len)
    out = jax.block_until_ready(positional_encoding_forward(x, pe, force_pallas=True))
    ref = (x.astype(jnp.float32) + pe[:, :S, :].astype(jnp.float32)).astype(x.dtype)
    assert out.shape == (B, S, H)
    assert jnp.allclose(out, ref, atol=1e-6, rtol=1e-6), "flat-layout mismatch vs reference"

    # Default call path (XLA fast path at this tiny shape) must agree as well.
    out_fast = jax.block_until_ready(positional_encoding_forward(x, pe))
    assert jnp.allclose(out_fast, ref, atol=1e-6, rtol=1e-6), "fast-path mismatch"

    # 2) Small batch + lane-dense hidden dim -> sublane (row) layout path.
    B2, S2, H2 = 2, 16, 128
    x2 = jax.random.normal(jax.random.PRNGKey(0), (B2, S2, H2), dtype=jnp.float32)
    pe2 = make_positional_encoding(H2, max_len)
    out2 = jax.block_until_ready(positional_encoding_forward(x2, pe2, force_pallas=True))
    ref2 = x2 + pe2[:, :S2, :]
    assert jnp.allclose(out2, ref2, atol=1e-6, rtol=1e-6), "row-layout mismatch vs reference"

    # 3) bf16 activations with pe stored in the model dtype (halves pe HBM traffic).
    B3, S3, H3 = 4, 24, 128
    x3 = jax.random.normal(jax.random.PRNGKey(0), (B3, S3, H3),
                           dtype=jnp.float32).astype(jnp.bfloat16)
    pe3 = make_positional_encoding(H3, max_len, dtype=jnp.bfloat16)
    out3 = jax.block_until_ready(positional_encoding_forward(x3, pe3, force_pallas=True))
    ref3 = (x3.astype(jnp.float32) + pe3[:, :S3, :].astype(jnp.float32)).astype(jnp.bfloat16)
    assert jnp.allclose(out3.astype(jnp.float32), ref3.astype(jnp.float32),
                        atol=1e-2, rtol=1e-2), "bf16 mismatch vs reference"

    print("KERNEL_OK")
</pallas_src>

<mosaic_0001>
module attributes {stable_mosaic.version = 11 : i64} {
  func.func @_add_pe_kernel(%arg0: i32, %arg1: i32, %arg2: memref<2x128xf32, #tpu.memory_space<vmem>>, %arg3: memref<1x128xf32, #tpu.memory_space<vmem>>, %arg4: memref<2x128xf32, #tpu.memory_space<vmem>>) attributes {dimension_semantics = [#tpu.dimension_semantics<parallel>, #tpu.dimension_semantics<parallel>], iteration_bounds = array<i64: 1, 2>, scalar_prefetch = 0 : i64, scratch_operands = 0 : i64, tpu.core_type = #tpu.core_type<tc>, window_params = [{transform_indices = @transform_0, window_bounds = array<i64: 2, 128>}, {transform_indices = @transform_1, window_bounds = array<i64: 1, 128>}, {transform_indices = @transform_2, window_bounds = array<i64: 2, 128>}]} {
    %c0 = arith.constant 0 : index
    %c0_0 = arith.constant 0 : index
    %0 = vector.load %arg2[%c0, %c0_0] : memref<2x128xf32, #tpu.memory_space<vmem>>, vector<2x128xf32>
    %c0_1 = arith.constant 0 : index
    %c0_2 = arith.constant 0 : index
    %1 = vector.load %arg3[%c0_1, %c0_2] : memref<1x128xf32, #tpu.memory_space<vmem>>, vector<1x128xf32>
    %2 = vector.broadcast %1 : vector<1x128xf32> to vector<2x128xf32>
    %3 = arith.addf %0, %2 : vector<2x128xf32>
    %c0_3 = arith.constant 0 : index
    %c0_4 = arith.constant 0 : index
    %4 = vector.load %arg4[%c0_3, %c0_4] : memref<2x128xf32, #tpu.memory_space<vmem>>, vector<2x128xf32>
    tpu.vector_store %arg4[%c0_3, %c0_4], %3 {strides = array<i32>} : memref<2x128xf32, #tpu.memory_space<vmem>>, vector<2x128xf32>,
    return
  }
  func.func @transform_0(%arg0: i32, %arg1: i32) -> (i32, i32) {
    %c0_i32 = arith.constant 0 : i32
    return %arg0, %arg1 : i32, i32
  }
  func.func @transform_1(%arg0: i32, %arg1: i32) -> (i32, i32) {
    %c0_i32 = arith.constant 0 : i32
    %c0_i32_0 = arith.constant 0 : i32
    return %c0_i32, %arg1 : i32, i32
  }
  func.func @transform_2(%arg0: i32, %arg1: i32) -> (i32, i32) {
    %c0_i32 = arith.constant 0 : i32
    return %arg0, %arg1 : i32, i32
  }
}

</mosaic_0001>

<llo_original>
// kernel: positional_encoding_forward.1
$region0: #{positional_encoding_forward.1}
  #allocation0 [shape = 'u32[]', space=smem, size = 0x4, offset = 0x4, fixed_abs, tag = 'smem constant byte address 0x4 - core index']
  #allocation1 [shape = 'u32[72,128]{1,0:T(1,128)}', space=vmem, size = 0x9000, scoped, tag = 'internal scratch']
  %s0 = inlined_call_operand.vmem [shape: f32[2,256], index: 0, kind: input, shape index: {}]
  %s1 = inlined_call_operand.vmem [shape: f32[1,160000], index: 1, kind: input, shape index: {}]
  %s2 = inlined_call_operand.vmem [shape: f32[2,256], index: 2, kind: output, shape index: {}]
  %s3 = sld [smem:[#allocation0]]
  $region41: #{positional_encoding_forward.1} parent=0
    _
  %s5 = ssub.s32 1, %s3
  %s6 = scalar_select 0, %s5, %s3
  loop: start=0, step=1, limit=4
  $region2: #{positional_encoding_forward.1} parent=0 // loop_pre_header
    _
  $region3: #{positional_encoding_forward.1} parent=0 // loop_header
    %s8 = sphi 0, %s12
    %p9 = scmp.ge.s32.totalorder %s8, 4
    %s15 = sphi 0, %s27
    %s16 = sphi 0, %s23
    %s17 = sphi 0, %s15
    %s18 = sphi 0, %s16
    %s19 = sphi 0, %s17
    %s20 = sphi 0, %s18
    %s32 = sphi 0, %s34
    %s35 = sphi 0, %s32
    %s36 = sphi 0, %s35
    %s52 = sphi 0, %s36
    %s58 = sphi 0, %s60
    %s61 = sphi 0, %s58
    %s62 = sphi 0, %s61
    %s78 = sphi 0, %s62
    %s86 = sphi 0, %s88
    %s89 = sphi 0, %s86
    %s90 = sphi 0, %s89
    %s106 = sphi 0, %s90
  $region4: #{positional_encoding_forward.1} parent=0 // loop_header_branch
    %11 = sbr.rel (%p9) target = $region8
  $region5: #{positional_encoding_forward.1} parent=0 // loop_body
    %s13 = ssub.s32 %s8, 1
    %s14 = ssub.s32 %s8, 2
    %s21 = sadd.s32 1, %s16
    %p22 = scmp.ge.s32.totalorder %s21, 2
    %s23 = scalar_select %p22, 0, %s21
    %s24 = sadd.s32 1, %s15
    %s25 = scalar_select %p22, %s24, %s15
    %p26 = scmp.ge.s32.totalorder %s25, 1
    %s27 = scalar_select %p26, 0, %s25
    %s28 = ssub.s32 %s15, %s27
    %s29 = ssub.s32 %s16, %s23
    %s30 = sor.u32 %s28, %s29
    %p31 = scmp.eq.s32.totalorder %s30, 0
    %s33 = sadd.s32 %s32, 1
    %s34 = scalar_select %p31, %s32, %s33
    %p37 = pneg %p31
    %p38 = scmp.eq.s32.totalorder %s8, 1
    %p39 = por %p37, %p38
    %p40 = scmp.ne.s32.totalorder %s32, %s35
    %p41 = scmp.eq.s32.totalorder %s8, 0
    %p42 = por %p40, %p41
    %p43 = scmp.ne.s32.totalorder %s32, %s35
    %p44 = scmp.eq.s32.totalorder %s13, 1
    %p45 = por %p43, %p44
    %p46 = scmp.ne.s32.totalorder %s35, %s36
    %p47 = scmp.eq.s32.totalorder %s13, 0
    %p48 = por %p46, %p47
    %p49 = scmp.ne.s32.totalorder %s35, %s36
    %p50 = scmp.eq.s32.totalorder %s14, 1
    %p51 = por %p49, %p50
    %p53 = scmp.ne.s32.totalorder %s36, %s52
    %p54 = scmp.eq.s32.totalorder %s14, 0
    %p55 = por %p53, %p54
    %s56 = ssub.s32 %s16, %s23
    %p57 = scmp.eq.s32.totalorder %s56, 0
    %s59 = sadd.s32 %s58, 1
    %s60 = scalar_select %p57, %s58, %s59
    %p63 = pneg %p57
    %p64 = scmp.eq.s32.totalorder %s8, 1
    %p65 = por %p63, %p64
    %p66 = scmp.ne.s32.totalorder %s58, %s61
    %p67 = scmp.eq.s32.totalorder %s8, 0
    %p68 = por %p66, %p67
    %p69 = scmp.ne.s32.totalorder %s58, %s61
    %p70 = scmp.eq.s32.totalorder %s13, 1
    %p71 = por %p69, %p70
    %p72 = scmp.ne.s32.totalorder %s61, %s62
    %p73 = scmp.eq.s32.totalorder %s13, 0
    %p74 = por %p72, %p73
    %p75 = scmp.ne.s32.totalorder %s61, %s62
    %p76 = scmp.eq.s32.totalorder %s14, 1
    %p77 = por %p75, %p76
    %p79 = scmp.ne.s32.totalorder %s62, %s78
    %p80 = scmp.eq.s32.totalorder %s14, 0
    %p81 = por %p79, %p80
    %s82 = ssub.s32 %s15, %s27
    %s83 = ssub.s32 %s16, %s23
    %s84 = sor.u32 %s82, %s83
    %p85 = scmp.eq.s32.totalorder %s84, 0
    %s87 = sadd.s32 %s86, 1
    %s88 = scalar_select %p85, %s86, %s87
    %p91 = pneg %p85
    %p92 = scmp.eq.s32.totalorder %s8, 1
    %p93 = por %p91, %p92
    %p94 = scmp.ne.s32.totalorder %s86, %s89
    %p95 = scmp.eq.s32.totalorder %s8, 0
    %p96 = por %p94, %p95
    %p97 = scmp.ne.s32.totalorder %s86, %s89
    %p98 = scmp.eq.s32.totalorder %s13, 1
    %p99 = por %p97, %p98
    %p100 = scmp.ne.s32.totalorder %s89, %s90
    %p101 = scmp.eq.s32.totalorder %s13, 0
    %p102 = por %p100, %p101
    %p103 = scmp.ne.s32.totalorder %s89, %s90
    %p104 = scmp.eq.s32.totalorder %s14, 1
    %p105 = por %p103, %p104
    %p107 = scmp.ne.s32.totalorder %s90, %s106
    %p108 = scmp.eq.s32.totalorder %s14, 0
    %p109 = por %p107, %p108
    %p110 = scmp.le.s32.totalorder 1, %s8
    %p111 = scmp.lt.s32.totalorder %s8, 3
    %p112 = pnand %p110, %p111
    %p113 = pneg %p112
    // Predicated region
    $region9: #{positional_encoding_forward.1} parent=5 // pred_check
      _
    $region10: #{positional_encoding_forward.1} parent=5 // pred_check_branch
      %115 = sbr.rel (%p112) target = $region12
    $region11: #{positional_encoding_forward.1} parent=5 // pred_region
      %s116 = ssub.s32 %s8, 1
    $region12: #{positional_encoding_forward.1} parent=5 // pred_fallthru
      _
    %p117 = scmp.lt.s32.totalorder %s8, 2
    // Predicated region
    $region13: #{positional_encoding_forward.1} parent=5 // pred_check
      %p118 = pneg %p117
    $region14: #{positional_encoding_forward.1} parent=5 // pred_check_branch
      %120 = sbr.rel (%p118) target = $region16
    $region15: #{positional_encoding_forward.1} parent=5 // pred_region
      // Predicated region
      $region17: #{positional_encoding_forward.1} parent=15 // pred_check
        %p121 = pneg %p42
      $region18: #{positional_encoding_forward.1} parent=15 // pred_check_branch
        %123 = sbr.rel (%p121) target = $region20
      $region19: #{positional_encoding_forward.1} parent=15 // pred_region
        %p124 = scmp.lt.s32.totalorder %s15, 0
        %s125 = scalar_select %p124, %s15, 0
        %p126 = scmp.lt.s32.totalorder %s16, 1
        %s127 = scalar_select %p126, %s16, 1
        %s128 = smul.addr %s125, 2
        %s129 = sadd.s32 %s127, %s128
        %s130 = smul.addr %s129, 2
        %s131 = scalar_lea.vmem %s0, %s130
      $region20: #{positional_encoding_forward.1} parent=15 // pred_fallthru
        _
      // Predicated region
      $region21: #{positional_encoding_forward.1} parent=15 // pred_check
        %p132 = pneg %p68
      $region22: #{positional_encoding_forward.1} parent=15 // pred_check_branch
        %134 = sbr.rel (%p132) target = $region24
      $region23: #{positional_encoding_forward.1} parent=15 // pred_region
        %p135 = scmp.lt.s32.totalorder %s16, 1249
        %s136 = scalar_select %p135, %s16, 1249
        %s137 = scalar_lea.vmem %s1, %s136
      $region24: #{positional_encoding_forward.1} parent=15 // pred_fallthru
        _
    $region16: #{positional_encoding_forward.1} parent=5 // pred_fallthru
      _
    %p138 = scmp.le.s32.totalorder 1, %s8
    %p139 = scmp.lt.s32.totalorder %s8, 3
    %p140 = pnand %p138, %p139
    %p141 = pneg %p140
    // Predicated region
    $region25: #{positional_encoding_forward.1} parent=5 // pred_check
      _
    $region26: #{positional_encoding_forward.1} parent=5 // pred_check_branch
      %143 = sbr.rel (%p140) target = $region28
    $region27: #{positional_encoding_forward.1} parent=5 // pred_region
      %s144 = ssub.s32 %s8, 1
      %p145 = scmp.lt.s32.totalorder %s17, 0
      %s146 = scalar_select %p145, %s17, 0
      %p147 = scmp.lt.s32.totalorder %s18, 1
      %s148 = scalar_select %p147, %s18, 1
      %s149 = smul.addr %s146, 2
      %s150 = sadd.s32 %s148, %s149
      %s151 = smul.addr %s150, 2
      %s152 = scalar_lea.vmem %s0, %s151
      %p153 = pneg %p48
      %p154 = pneg %p45
      %p155 = scmp.lt.s32.totalorder %s18, 1249
      %s156 = scalar_select %p155, %s18, 1249
      %s157 = scalar_lea.vmem %s1, %s156
      %p158 = pneg %p74
      %p159 = pneg %p71
      %p160 = pneg %p102
      %p161 = pneg %p99
      %p162 = scmp.lt.s32.totalorder %s17, 0
      %s163 = scalar_select %p162, %s17, 0
      %p164 = scmp.lt.s32.totalorder %s18, 1
      %s165 = scalar_select %p164, %s18, 1
      %s166 = smul.addr %s163, 2
      %s167 = sadd.s32 %s165, %s166
      %s168 = smul.addr %s167, 2
      %s169 = scalar_lea.vmem %s2, %s168
      %p170 = scmp.lt.s32.totalorder %s17, 0
      %s171 = scalar_select %p170, %s17, 0
      %p172 = scmp.lt.s32.totalorder %s18, 1
      %s173 = scalar_select %p172, %s18, 1
      %s174 = smul.addr %s171, 2
      %s175 = sadd.s32 %s173, %s174
      %s176 = smul.addr %s175, 2
      %s177 = scalar_lea.vmem %s0, %s176
      %p178 = scmp.lt.s32.totalorder %s18, 1249
      %s179 = scalar_select %p178, %s18, 1249
      %s180 = scalar_lea.vmem %s1, %s179
      %p181 = scmp.lt.s32.totalorder %s17, 0
      %s182 = scalar_select %p181, %s17, 0
      %p183 = scmp.lt.s32.totalorder %s18, 1
      %s184 = scalar_select %p183, %s18, 1
      %s185 = smul.addr %s182, 2
      %s186 = sadd.s32 %s184, %s185
      %s187 = smul.addr %s186, 2
      %s188 = scalar_lea.vmem %s2, %s187
      %v189 = vld [vmem:[%s177] sm:$0x3]
      %v190 = vld [vmem:[%s180] sm:$0x1]
      %v192 = vperm.slane %v190, 0
      %v194 = vadd.f32 %v189, %v192
      %195 = vst [vmem:[%s188] sm:$0x3] %v194
      %p196 = scmp.lt.s32.totalorder %s17, 0
      %s197 = scalar_select %p196, %s17, 0
      %p198 = scmp.lt.s32.totalorder %s18, 1
      %s199 = scalar_select %p198, %s18, 1
      %s200 = smul.addr %s197, 2
      %s201 = sadd.s32 %s199, %s200
      %s202 = smul.addr %s201, 2
      %s203 = scalar_lea.vmem %s2, %s202
      // Predicated region
      $region29: #{positional_encoding_forward.1} parent=27 // pred_check
        %p204 = pneg %p99
      $region30: #{positional_encoding_forward.1} parent=27 // pred_check_branch
        %206 = sbr.rel (%p204) target = $region32
      $region31: #{positional_encoding_forward.1} parent=27 // pred_region
        _
      $region32: #{positional_encoding_forward.1} parent=27 // pred_fallthru
        _
    $region28: #{positional_encoding_forward.1} parent=5 // pred_fallthru
      _
    %p207 = scmp.le.s32.totalorder 2, %s8
    // Predicated region
    $region33: #{positional_encoding_forward.1} parent=5 // pred_check
      %p208 = pneg %p207
    $region34: #{positional_encoding_forward.1} parent=5 // pred_check_branch
      %210 = sbr.rel (%p208) target = $region36
    $region35: #{positional_encoding_forward.1} parent=5 // pred_region
      %s211 = ssub.s32 %s8, 2
      // Predicated region
      $region37: #{positional_encoding_forward.1} parent=35 // pred_check
        %p212 = pneg %p105
      $region38: #{positional_encoding_forward.1} parent=35 // pred_check_branch
        %214 = sbr.rel (%p212) target = $region40
      $region39: #{positional_encoding_forward.1} parent=35 // pred_region
        %p215 = scmp.lt.s32.totalorder %s19, 0
        %s216 = scalar_select %p215, %s19, 0
        %p217 = scmp.lt.s32.totalorder %s20, 1
        %s218 = scalar_select %p217, %s20, 1
        %s219 = smul.addr %s216, 2
        %s220 = sadd.s32 %s218, %s219
        %s221 = smul.addr %s220, 2
        %s222 = scalar_lea.vmem %s2, %s221
      $region40: #{positional_encoding_forward.1} parent=35 // pred_fallthru
        _
    $region36: #{positional_encoding_forward.1} parent=5 // pred_fallthru
      _
  $region6: #{positional_encoding_forward.1} parent=0 // loop_footer
    %s12 = sadd.s32 1, %s8
  $region7: #{positional_encoding_forward.1} parent=0 // loop_footer_branch
    %7 = sbr.rel target = $region3
  $region8: #{positional_encoding_forward.1} parent=0 // loop_exit
    _

</llo_original>
